<compile_context>
chip_gen: v6e
topology: v6e:2x2x1
jax: 0.10.0
libtpu: 0.0.40
codegen_flags: <defaults>
</compile_context>

<pallas_src>
import jax
import jax.numpy as jnp
from jax.experimental import pallas as pl
from jax.experimental.pallas import tpu as pltpu

E_NUM = 1          # e_num = 1 if criterion_s else 2  -> choose criterion_s = True
U_NUM = 100
V_NUM = 512
IN_DIM = U_NUM + 2 * V_NUM + E_NUM   # 1125 (only used by the f32 reference)
HID = 256
OUT = V_NUM

SUBLANE = 8        # f32 sublane packing -> batch tiles are multiples of 8 rows
TB_MAX = 1024      # largest batch tile: ~15 MiB VMEM (f32 in/out tiles x2-buffered
                   # + ~1.6 MiB resident weights); fits the explicit 32 MiB limit
                   # on every generation (v5e default would only be 16 MiB).
VMEM_LIMIT_BYTES = 32 * 1024 * 1024


def _round_up(x, m):
    return (x + m - 1) // m * m


def _choose_tb(bs):
    """Balanced batch-tile size: <= TB_MAX rows, >= 2 tiles when splittable
    (keeps both v7x TensorCores busy), multiple of 8 sublanes."""
    n_tiles = max(pl.cdiv(bs, TB_MAX), 2 if bs >= 2 * SUBLANE else 1)
    tb = _round_up(pl.cdiv(bs, n_tiles), SUBLANE)
    return max(tb, SUBLANE)


def vphi_kernel(v1_ref, v2_ref, e_ref, w1v1_ref, w1v2_ref, w1e_ref,
                bias1_ref, w2_ref, b2_ref, o_ref):
    # Cast the streamed f32 activations to bf16 in-register (VPU, hidden under
    # DMA slack) -- avoids a separate host-side cast pass over HBM.
    v1b = v1_ref[...].astype(jnp.bfloat16)
    v2b = v2_ref[...].astype(jnp.bfloat16)

    # Layer 1: split-K matmuls (bf16 inputs, f32 accumulation on the MXU).
    h = jnp.dot(v1b, w1v1_ref[...], preferred_element_type=jnp.float32)
    h = h + jnp.dot(v2b, w1v2_ref[...], preferred_element_type=jnp.float32)
    # e is a single feature column: its W1 contribution is a rank-1 broadcast
    # multiply (VPU), cheaper than a K=1 matmul.  bias1 = u @ W1_u + b1 (f32).
    h = h + e_ref[...] * w1e_ref[...]
    h = h + bias1_ref[...]
    # LeakyReLU (torch default negative_slope = 0.01), in f32.
    h = jnp.where(h > 0, h, 0.01 * h)
    # Layer 2: bf16 inputs, f32 accumulation, f32 bias, f32 output.
    y = jnp.dot(h.astype(jnp.bfloat16), w2_ref[...],
                preferred_element_type=jnp.float32) + b2_ref[...]
    o_ref[...] = y.astype(o_ref.dtype)


def init_params(key):
    """Deterministic synthetic params; weights stored as (in, out), f32."""
    k1, k2, k3, k4 = jax.random.split(key, 4)
    s1 = 1.0 / jnp.sqrt(IN_DIM)
    s2 = 1.0 / jnp.sqrt(HID)
    w1 = jax.random.uniform(k1, (IN_DIM, HID), jnp.float32, -s1, s1)
    b1 = jax.random.uniform(k2, (HID,), jnp.float32, -s1, s1)
    w2 = jax.random.uniform(k3, (HID, OUT), jnp.float32, -s2, s2)
    b2 = jax.random.uniform(k4, (OUT,), jnp.float32, -s2, s2)
    return w1, b1, w2, b2


def prepare_params(w1, b1, w2, b2):
    """One-time (amortized) split of W1 by input segment + bf16 weight cast."""
    w1_e = w1[:E_NUM, :].astype(jnp.float32)                               # (1, 256)
    w1_v1 = w1[E_NUM:E_NUM + V_NUM, :].astype(jnp.bfloat16)                # (512, 256)
    w1_v2 = w1[E_NUM + V_NUM:E_NUM + 2 * V_NUM, :].astype(jnp.bfloat16)    # (512, 256)
    w1_u = w1[E_NUM + 2 * V_NUM:, :].astype(jnp.float32)                   # (100, 256)
    return dict(
        w1_e=w1_e,
        w1_v1=w1_v1,
        w1_v2=w1_v2,
        w1_u=w1_u,
        b1=b1.reshape(1, HID).astype(jnp.float32),
        w2=w2.astype(jnp.bfloat16),                                        # (256, 512)
        b2=b2.reshape(1, OUT).astype(jnp.float32),
    )


@jax.jit
def vphi_forward(e, v1, v2, u, params):
    """e:(bs,1) v1:(bs,512) v2:(bs,512) u:(1,100) -> (bs,512), all f32 in/out."""
    bs = e.shape[0]
    tb = _choose_tb(bs)
    grid_b = pl.cdiv(bs, tb)   # no host-side padding: Pallas masks the partial tile

    # Fold the u contribution and b1 into one (1, HID) bias row (tiny matmul);
    # this replaces the torch.cat(u,...) broadcast loop entirely.  If u is
    # fixed across calls this could be hoisted into prepare_params.
    bias1 = u.astype(jnp.float32) @ params["w1_u"] + params["b1"]          # (1, 256)

    out = pl.pallas_call(
        vphi_kernel,
        out_shape=jax.ShapeDtypeStruct((bs, OUT), jnp.float32),
        grid_spec=pltpu.PrefetchScalarGridSpec(
            num_scalar_prefetch=0,
            grid=(grid_b,),
            in_specs=[
                # streamed per batch tile (f32; bf16 cast happens in-kernel)
                pl.BlockSpec((tb, V_NUM), lambda i: (i, 0)),      # v1 (f32)
                pl.BlockSpec((tb, V_NUM), lambda i: (i, 0)),      # v2 (f32)
                pl.BlockSpec((tb, E_NUM), lambda i: (i, 0)),      # e  (f32)
                # resident across the whole grid (constant block index)
                pl.BlockSpec((V_NUM, HID), lambda i: (0, 0)),     # W1_v1 (bf16)
                pl.BlockSpec((V_NUM, HID), lambda i: (0, 0)),     # W1_v2 (bf16)
                pl.BlockSpec((E_NUM, HID), lambda i: (0, 0)),     # w1_e  (f32)
                pl.BlockSpec((1, HID), lambda i: (0, 0)),         # u@W1_u + b1 (f32)
                pl.BlockSpec((HID, OUT), lambda i: (0, 0)),       # W2 (bf16)
                pl.BlockSpec((1, OUT), lambda i: (0, 0)),         # b2 (f32)
            ],
            out_specs=pl.BlockSpec((tb, OUT), lambda i: (i, 0)),
        ),
        compiler_params=pltpu.CompilerParams(
            # TODO(synk): on v7x, pltpu.CORE_PARALLEL (or a core_map) would shard
            # the batch axis across both TensorCores explicitly.
            dimension_semantics=("parallel",),
            vmem_limit_bytes=VMEM_LIMIT_BYTES),
    )(v1.astype(jnp.float32), v2.astype(jnp.float32), e.astype(jnp.float32),
      params["w1_v1"], params["w1_v2"], params["w1_e"],
      bias1, params["w2"], params["b2"])

    return out


if __name__ == "__main__":
    key = jax.random.PRNGKey(0)
    kp, ke, kv1, kv2, ku = jax.random.split(key, 5)
    w1, b1, w2, b2 = init_params(kp)
    params = prepare_params(w1, b1, w2, b2)

    bs = 8
    e = jax.random.normal(ke, (bs, E_NUM), jnp.float32)
    v1 = jax.random.normal(kv1, (bs, V_NUM), jnp.float32)
    v2 = jax.random.normal(kv2, (bs, V_NUM), jnp.float32)
    u = jax.random.normal(ku, (1, U_NUM), jnp.float32)

    out = vphi_forward(e, v1, v2, u, params)
    out = jax.block_until_ready(out)

    # Pure-JAX f32 reference of the original module semantics.
    x_ref = jnp.concatenate([e, v1, v2, jnp.broadcast_to(u, (bs, U_NUM))], axis=1)
    h_ref = x_ref @ w1 + b1
    h_ref = jnp.where(h_ref > 0, h_ref, 0.01 * h_ref)
    y_ref = h_ref @ w2 + b2

    assert out.shape == (bs, OUT)
    # bf16 MXU inputs (f32 accumulation) -> loosened tolerance vs the f32 ref.
    assert jnp.allclose(out, y_ref, atol=5e-2, rtol=5e-2), \
        float(jnp.max(jnp.abs(out - y_ref)))

    print("KERNEL_OK")
</pallas_src>

<mosaic_0001>
module attributes {stable_mosaic.version = 11 : i64} {
  func.func @vphi_kernel(%arg0: i32, %arg1: memref<8x512xf32, #tpu.memory_space<vmem>>, %arg2: memref<8x512xf32, #tpu.memory_space<vmem>>, %arg3: memref<8x1xf32, #tpu.memory_space<vmem>>, %arg4: memref<512x256xbf16, #tpu.memory_space<vmem>>, %arg5: memref<512x256xbf16, #tpu.memory_space<vmem>>, %arg6: memref<1x256xf32, #tpu.memory_space<vmem>>, %arg7: memref<1x256xf32, #tpu.memory_space<vmem>>, %arg8: memref<256x512xbf16, #tpu.memory_space<vmem>>, %arg9: memref<1x512xf32, #tpu.memory_space<vmem>>, %arg10: memref<8x512xf32, #tpu.memory_space<vmem>>) attributes {dimension_semantics = [#tpu.dimension_semantics<parallel>], iteration_bounds = array<i64: 1>, scalar_prefetch = 0 : i64, scratch_operands = 0 : i64, tpu.core_type = #tpu.core_type<tc>, window_params = [{transform_indices = @transform_0, window_bounds = array<i64: 8, 512>}, {transform_indices = @transform_1, window_bounds = array<i64: 8, 512>}, {transform_indices = @transform_2, window_bounds = array<i64: 8, 1>}, {pipeline_mode = #tpu.pipeline_mode<synchronous>, transform_indices = @transform_3, window_bounds = array<i64: 512, 256>}, {pipeline_mode = #tpu.pipeline_mode<synchronous>, transform_indices = @transform_4, window_bounds = array<i64: 512, 256>}, {pipeline_mode = #tpu.pipeline_mode<synchronous>, transform_indices = @transform_5, window_bounds = array<i64: 1, 256>}, {pipeline_mode = #tpu.pipeline_mode<synchronous>, transform_indices = @transform_6, window_bounds = array<i64: 1, 256>}, {pipeline_mode = #tpu.pipeline_mode<synchronous>, transform_indices = @transform_7, window_bounds = array<i64: 256, 512>}, {pipeline_mode = #tpu.pipeline_mode<synchronous>, transform_indices = @transform_8, window_bounds = array<i64: 1, 512>}, {transform_indices = @transform_9, window_bounds = array<i64: 8, 512>}]} {
    %c0 = arith.constant 0 : index
    %c0_0 = arith.constant 0 : index
    %0 = vector.load %arg1[%c0, %c0_0] : memref<8x512xf32, #tpu.memory_space<vmem>>, vector<8x512xf32>
    %1 = arith.truncf %0 : vector<8x512xf32> to vector<8x512xbf16>
    %c0_1 = arith.constant 0 : index
    %c0_2 = arith.constant 0 : index
    %2 = vector.load %arg2[%c0_1, %c0_2] : memref<8x512xf32, #tpu.memory_space<vmem>>, vector<8x512xf32>
    %3 = arith.truncf %2 : vector<8x512xf32> to vector<8x512xbf16>
    %c0_3 = arith.constant 0 : index
    %c0_4 = arith.constant 0 : index
    %4 = vector.load %arg4[%c0_3, %c0_4] : memref<512x256xbf16, #tpu.memory_space<vmem>>, vector<512x256xbf16>
    %cst = arith.constant dense<0.000000e+00> : vector<8x256xf32>
    %5 = tpu.matmul %1, %4, %cst {dimension_numbers = #tpu.dot_dimension_numbers<[1], [0], [0], [1], [0, 0, 1, 1], [], []>} : vector<8x512xbf16>, vector<512x256xbf16>, vector<8x256xf32> -> vector<8x256xf32>
    %c0_5 = arith.constant 0 : index
    %c0_6 = arith.constant 0 : index
    %6 = vector.load %arg5[%c0_5, %c0_6] : memref<512x256xbf16, #tpu.memory_space<vmem>>, vector<512x256xbf16>
    %cst_7 = arith.constant dense<0.000000e+00> : vector<8x256xf32>
    %7 = tpu.matmul %3, %6, %cst_7 {dimension_numbers = #tpu.dot_dimension_numbers<[1], [0], [0], [1], [0, 0, 1, 1], [], []>} : vector<8x512xbf16>, vector<512x256xbf16>, vector<8x256xf32> -> vector<8x256xf32>
    %8 = arith.addf %5, %7 : vector<8x256xf32>
    %c0_8 = arith.constant 0 : index
    %c0_9 = arith.constant 0 : index
    %9 = vector.load %arg3[%c0_8, %c0_9] : memref<8x1xf32, #tpu.memory_space<vmem>>, vector<8x1xf32>
    %c0_10 = arith.constant 0 : index
    %c0_11 = arith.constant 0 : index
    %10 = vector.load %arg6[%c0_10, %c0_11] : memref<1x256xf32, #tpu.memory_space<vmem>>, vector<1x256xf32>
    %11 = vector.broadcast %9 : vector<8x1xf32> to vector<8x256xf32>
    %12 = vector.broadcast %10 : vector<1x256xf32> to vector<8x256xf32>
    %13 = arith.mulf %11, %12 : vector<8x256xf32>
    %14 = arith.addf %8, %13 : vector<8x256xf32>
    %c0_12 = arith.constant 0 : index
    %c0_13 = arith.constant 0 : index
    %15 = vector.load %arg7[%c0_12, %c0_13] : memref<1x256xf32, #tpu.memory_space<vmem>>, vector<1x256xf32>
    %16 = vector.broadcast %15 : vector<1x256xf32> to vector<8x256xf32>
    %17 = arith.addf %14, %16 : vector<8x256xf32>
    %cst_14 = arith.constant 0.000000e+00 : f32
    %18 = vector.broadcast %cst_14 : f32 to vector<8x256xf32>
    %19 = arith.cmpf ogt, %17, %18 : vector<8x256xf32>
    %cst_15 = arith.constant 0.00999999977 : f32
    %20 = vector.broadcast %cst_15 : f32 to vector<8x256xf32>
    %21 = arith.mulf %20, %17 : vector<8x256xf32>
    %22 = arith.select %19, %17, %21 : vector<8x256xi1>, vector<8x256xf32>
    %23 = arith.truncf %22 : vector<8x256xf32> to vector<8x256xbf16>
    %c0_16 = arith.constant 0 : index
    %c0_17 = arith.constant 0 : index
    %24 = vector.load %arg8[%c0_16, %c0_17] : memref<256x512xbf16, #tpu.memory_space<vmem>>, vector<256x512xbf16>
    %cst_18 = arith.constant dense<0.000000e+00> : vector<8x512xf32>
    %25 = tpu.matmul %23, %24, %cst_18 {dimension_numbers = #tpu.dot_dimension_numbers<[1], [0], [0], [1], [0, 0, 1, 1], [], []>} : vector<8x256xbf16>, vector<256x512xbf16>, vector<8x512xf32> -> vector<8x512xf32>
    %c0_19 = arith.constant 0 : index
    %c0_20 = arith.constant 0 : index
    %26 = vector.load %arg9[%c0_19, %c0_20] : memref<1x512xf32, #tpu.memory_space<vmem>>, vector<1x512xf32>
    %27 = vector.broadcast %26 : vector<1x512xf32> to vector<8x512xf32>
    %28 = arith.addf %25, %27 : vector<8x512xf32>
    %c0_21 = arith.constant 0 : index
    %c0_22 = arith.constant 0 : index
    %29 = vector.load %arg10[%c0_21, %c0_22] : memref<8x512xf32, #tpu.memory_space<vmem>>, vector<8x512xf32>
    tpu.vector_store %arg10[%c0_21, %c0_22], %28 {strides = array<i32>} : memref<8x512xf32, #tpu.memory_space<vmem>>, vector<8x512xf32>,
    return
  }
  func.func @transform_0(%arg0: i32) -> (i32, i32) {
    %c0_i32 = arith.constant 0 : i32
    %c0_i32_0 = arith.constant 0 : i32
    return %arg0, %c0_i32 : i32, i32
  }
  func.func @transform_1(%arg0: i32) -> (i32, i32) {
    %c0_i32 = arith.constant 0 : i32
    %c0_i32_0 = arith.constant 0 : i32
    return %arg0, %c0_i32 : i32, i32
  }
  func.func @transform_2(%arg0: i32) -> (i32, i32) {
    %c0_i32 = arith.constant 0 : i32
    %c0_i32_0 = arith.constant 0 : i32
    return %arg0, %c0_i32 : i32, i32
  }
  func.func @transform_3(%arg0: i32) -> (i32, i32) {
    %c0_i32 = arith.constant 0 : i32
    %c0_i32_0 = arith.constant 0 : i32
    %c0_i32_1 = arith.constant 0 : i32
    return %c0_i32, %c0_i32_0 : i32, i32
  }
  func.func @transform_4(%arg0: i32) -> (i32, i32) {
    %c0_i32 = arith.constant 0 : i32
    %c0_i32_0 = arith.constant 0 : i32
    %c0_i32_1 = arith.constant 0 : i32
    return %c0_i32, %c0_i32_0 : i32, i32
  }
  func.func @transform_5(%arg0: i32) -> (i32, i32) {
    %c0_i32 = arith.constant 0 : i32
    %c0_i32_0 = arith.constant 0 : i32
    %c0_i32_1 = arith.constant 0 : i32
    return %c0_i32, %c0_i32_0 : i32, i32
  }
  func.func @transform_6(%arg0: i32) -> (i32, i32) {
    %c0_i32 = arith.constant 0 : i32
    %c0_i32_0 = arith.constant 0 : i32
    %c0_i32_1 = arith.constant 0 : i32
    return %c0_i32, %c0_i32_0 : i32, i32
  }
  func.func @transform_7(%arg0: i32) -> (i32, i32) {
    %c0_i32 = arith.constant 0 : i32
    %c0_i32_0 = arith.constant 0 : i32
    %c0_i32_1 = arith.constant 0 : i32
    return %c0_i32, %c0_i32_0 : i32, i32
  }
  func.func @transform_8(%arg0: i32) -> (i32, i32) {
    %c0_i32 = arith.constant 0 : i32
    %c0_i32_0 = arith.constant 0 : i32
    %c0_i32_1 = arith.constant 0 : i32
    return %c0_i32, %c0_i32_0 : i32, i32
  }
  func.func @transform_9(%arg0: i32) -> (i32, i32) {
    %c0_i32 = arith.constant 0 : i32
    %c0_i32_0 = arith.constant 0 : i32
    return %arg0, %c0_i32 : i32, i32
  }
}

</mosaic_0001>

<llo_original>
// kernel: vphi_forward.1
$region0: #{vphi_forward.1}
  #allocation0 [shape = 'u32[]', space=smem, size = 0x4, offset = 0x4, fixed_abs, tag = 'smem constant byte address 0x4 - core index']
  #allocation1 [shape = 'u32[144,128]{1,0:T(1,128)}', space=vmem, size = 0x12000, scoped, tag = 'internal scratch']
  %s0 = inlined_call_operand.vmem [shape: f32[8,512], index: 0, kind: input, shape index: {}]
  %s1 = inlined_call_operand.vmem [shape: f32[8,512], index: 1, kind: input, shape index: {}]
  %s2 = inlined_call_operand.vmem [shape: f32[8,1], index: 2, kind: input, shape index: {}]
  %s3 = inlined_call_operand.hbm [shape: bf16[512,256], index: 3, kind: input, shape index: {}]
  %s4 = inlined_call_operand.hbm [shape: bf16[512,256], index: 4, kind: input, shape index: {}]
  %s5 = inlined_call_operand.vmem [shape: f32[1,256], index: 5, kind: input, shape index: {}]
  %s6 = inlined_call_operand.vmem [shape: f32[1,256], index: 6, kind: input, shape index: {}]
  %s7 = inlined_call_operand.hbm [shape: bf16[256,512], index: 7, kind: input, shape index: {}]
  %s8 = inlined_call_operand.vmem [shape: f32[1,512], index: 8, kind: input, shape index: {}]
  %s9 = inlined_call_operand.hbm [shape: f32[8,512], index: 9, kind: output, shape index: {}]
  %s10 = sld [smem:[#allocation0]]
  $region58: #{vphi_forward.1} parent=0
    _
  %s12 = ssub.s32 1, %s10
  %s13 = scalar_select 0, %s12, %s10
  $region1: #{vphi_forward.1} parent=0
    #allocation2 [shape = 'u8[262144]{0}', space=vmem, size = 0x40000, scoped, tag = 'input window, operand 3, single buffered']
    #allocation3 [shape = 's32[1]{0}', space=sflag, size = 0x4, scoped, tag = 'scoped memory for vphi_forward.1']
    #allocation4 [shape = 's32[1]{0}', space=sflag, size = 0x4, scoped, tag = 'scoped memory for vphi_forward.1']
    #allocation5 [shape = 'u8[262144]{0}', space=vmem, size = 0x40000, scoped, tag = 'input window, operand 4, single buffered']
    #allocation6 [shape = 's32[1]{0}', space=sflag, size = 0x4, scoped, tag = 'scoped memory for vphi_forward.1']
    #allocation7 [shape = 'u8[262144]{0}', space=vmem, size = 0x40000, scoped, tag = 'input window, operand 7, single buffered']
    #allocation8 [shape = 'u8[16384]{0}', space=vmem, size = 0x4000, scoped, tag = 'output window, operand 0, single buffered']
    %14 = vsyncpa [#allocation3], 0
    %15 = vsyncpa [#allocation6], 0
    %16 = vsyncpa [#allocation4], 0
    // Predicated region
    $region2: #{vphi_forward.1} parent=1 // pred_check
      _
    $region3: #{vphi_forward.1} parent=1 // pred_check_branch
      %18 = sbr.rel (0) target = $region5
    $region4: #{vphi_forward.1} parent=1 // pred_region
      _
    $region5: #{vphi_forward.1} parent=1 // pred_fallthru
      _
    // Predicated region
    $region6: #{vphi_forward.1} parent=1 // pred_check
      _
    $region7: #{vphi_forward.1} parent=1 // pred_check_branch
      %20 = sbr.rel (0) target = $region9
    $region8: #{vphi_forward.1} parent=1 // pred_region
      _
    $region9: #{vphi_forward.1} parent=1 // pred_fallthru
      _
    // Predicated region
    $region10: #{vphi_forward.1} parent=1 // pred_check
      _
    $region11: #{vphi_forward.1} parent=1 // pred_check_branch
      %22 = sbr.rel (0) target = $region13
    $region12: #{vphi_forward.1} parent=1 // pred_region
      _
    $region13: #{vphi_forward.1} parent=1 // pred_fallthru
      _
    // Predicated region
    $region14: #{vphi_forward.1} parent=1 // pred_check
      _
    $region15: #{vphi_forward.1} parent=1 // pred_check_branch
      %24 = sbr.rel (0) target = $region17
    $region16: #{vphi_forward.1} parent=1 // pred_region
      %s26 = ssub.s32 8192, 8192
      %27 = vsyncadd [#allocation3], %s26
      %s28 = sshll.u32 [#allocation2], 4
      %s29 = int_to_ptr.vmem [resolvable:$true] %s28
      %34 = dma.hbm_to_vmem [thread:$0]  %s3, 8192, %s29, [#allocation3], 128, 128, 8
    $region17: #{vphi_forward.1} parent=1 // pred_fallthru
      _
    // Predicated region
    $region18: #{vphi_forward.1} parent=1 // pred_check
      _
    $region19: #{vphi_forward.1} parent=1 // pred_check_branch
      %36 = sbr.rel (0) target = $region21
    $region20: #{vphi_forward.1} parent=1 // pred_region
      %s38 = ssub.s32 8192, 8192
      %39 = vsyncadd [#allocation6], %s38
      %s40 = sshll.u32 [#allocation5], 4
      %s41 = int_to_ptr.vmem [resolvable:$true] %s40
      %46 = dma.hbm_to_vmem [thread:$0]  %s4, 8192, %s41, [#allocation6], 128, 128, 8
    $region21: #{vphi_forward.1} parent=1 // pred_fallthru
      _
    // Predicated region
    $region22: #{vphi_forward.1} parent=1 // pred_check
      _
    $region23: #{vphi_forward.1} parent=1 // pred_check_branch
      %48 = sbr.rel (0) target = $region25
    $region24: #{vphi_forward.1} parent=1 // pred_region
      _
    $region25: #{vphi_forward.1} parent=1 // pred_fallthru
      _
    // Predicated region
    $region26: #{vphi_forward.1} parent=1 // pred_check
      _
    $region27: #{vphi_forward.1} parent=1 // pred_check_branch
      %50 = sbr.rel (0) target = $region29
    $region28: #{vphi_forward.1} parent=1 // pred_region
      _
    $region29: #{vphi_forward.1} parent=1 // pred_fallthru
      _
    // Predicated region
    $region30: #{vphi_forward.1} parent=1 // pred_check
      _
    $region31: #{vphi_forward.1} parent=1 // pred_check_branch
      %52 = sbr.rel (0) target = $region33
    $region32: #{vphi_forward.1} parent=1 // pred_region
      %s54 = ssub.s32 8192, 8192
      %55 = vsyncadd [#allocation6], %s54
      %s56 = sshll.u32 [#allocation7], 4
      %s57 = int_to_ptr.vmem [resolvable:$true] %s56
      %62 = dma.hbm_to_vmem [thread:$0]  %s7, 8192, %s57, [#allocation6], 256, 256, 16
    $region33: #{vphi_forward.1} parent=1 // pred_fallthru
      _
    // Predicated region
    $region34: #{vphi_forward.1} parent=1 // pred_check
      _
    $region35: #{vphi_forward.1} parent=1 // pred_check_branch
      %64 = sbr.rel (0) target = $region37
    $region36: #{vphi_forward.1} parent=1 // pred_region
      _
    $region37: #{vphi_forward.1} parent=1 // pred_fallthru
      _
    // Predicated region
    $region38: #{vphi_forward.1} parent=1 // pred_check
      _
    $region39: #{vphi_forward.1} parent=1 // pred_check_branch
      %66 = sbr.rel (0) target = $region41
    $region40: #{vphi_forward.1} parent=1 // pred_region
      %67 = dma.done [#allocation3], 8192
    $region41: #{vphi_forward.1} parent=1 // pred_fallthru
      _
    // Predicated region
    $region42: #{vphi_forward.1} parent=1 // pred_check
      _
    $region43: #{vphi_forward.1} parent=1 // pred_check_branch
      %69 = sbr.rel (0) target = $region45
    $region44: #{vphi_forward.1} parent=1 // pred_region
      %70 = dma.done [#allocation6], 8192
    $region45: #{vphi_forward.1} parent=1 // pred_fallthru
      _
    // Predicated region
    $region46: #{vphi_forward.1} parent=1 // pred_check
      _
    $region47: #{vphi_forward.1} parent=1 // pred_check_branch
      %72 = sbr.rel (0) target = $region49
    $region48: #{vphi_forward.1} parent=1 // pred_region
      %73 = dma.done [#allocation6], 8192
    $region49: #{vphi_forward.1} parent=1 // pred_fallthru
      _
    %v74 = vld [vmem:[%s0] sm:$0xff]
    %v75 = vld [vmem:[%s0 + $0x8] sm:$0xff]
    %v76 = vld [vmem:[%s0 + $0x10] sm:$0xff]
    %v77 = vld [vmem:[%s0 + $0x18] sm:$0xff]
    %v78 = vpack.c.bf16 %v74, %v74
    %v79 = vpack.c.bf16 %v75, %v75
    %v80 = vpack.c.bf16 %v76, %v76
    %v81 = vpack.c.bf16 %v77, %v77
    %v82 = vld [vmem:[%s1] sm:$0xff]
    %v83 = vld [vmem:[%s1 + $0x8] sm:$0xff]
    %v84 = vld [vmem:[%s1 + $0x10] sm:$0xff]
    %v85 = vld [vmem:[%s1 + $0x18] sm:$0xff]
    %v86 = vpack.c.bf16 %v82, %v82
    %v87 = vpack.c.bf16 %v83, %v83
    %v88 = vpack.c.bf16 %v84, %v84
    %v89 = vpack.c.bf16 %v85, %v85
    %v90 = vld [vmem:[#allocation2] sm:$0xff]
    %v91 = vld [vmem:[#allocation2 + $0x8] sm:$0xff]
    %v92 = vld [vmem:[#allocation2 + $0x10] sm:$0xff]
    %v93 = vld [vmem:[#allocation2 + $0x18] sm:$0xff]
    %v94 = vld [vmem:[#allocation2 + $0x20] sm:$0xff]
    %v95 = vld [vmem:[#allocation2 + $0x28] sm:$0xff]
    %v96 = vld [vmem:[#allocation2 + $0x30] sm:$0xff]
    %v97 = vld [vmem:[#allocation2 + $0x38] sm:$0xff]
    %v98 = vld [vmem:[#allocation2 + $0x40] sm:$0xff]
    %v99 = vld [vmem:[#allocation2 + $0x48] sm:$0xff]
    %v100 = vld [vmem:[#allocation2 + $0x50] sm:$0xff]
    %v101 = vld [vmem:[#allocation2 + $0x58] sm:$0xff]
    %v102 = vld [vmem:[#allocation2 + $0x60] sm:$0xff]
    %v103 = vld [vmem:[#allocation2 + $0x68] sm:$0xff]
    %v104 = vld [vmem:[#allocation2 + $0x70] sm:$0xff]
    %v105 = vld [vmem:[#allocation2 + $0x78] sm:$0xff]
    %v106 = vld [vmem:[#allocation2 + $0x80] sm:$0xff]
    %v107 = vld [vmem:[#allocation2 + $0x88] sm:$0xff]
    %v108 = vld [vmem:[#allocation2 + $0x90] sm:$0xff]
    %v109 = vld [vmem:[#allocation2 + $0x98] sm:$0xff]
    %v110 = vld [vmem:[#allocation2 + $0xa0] sm:$0xff]
    %v111 = vld [vmem:[#allocation2 + $0xa8] sm:$0xff]
    %v112 = vld [vmem:[#allocation2 + $0xb0] sm:$0xff]
    %v113 = vld [vmem:[#allocation2 + $0xb8] sm:$0xff]
    %v114 = vld [vmem:[#allocation2 + $0xc0] sm:$0xff]
    %v115 = vld [vmem:[#allocation2 + $0xc8] sm:$0xff]
    %v116 = vld [vmem:[#allocation2 + $0xd0] sm:$0xff]
    %v117 = vld [vmem:[#allocation2 + $0xd8] sm:$0xff]
    %v118 = vld [vmem:[#allocation2 + $0xe0] sm:$0xff]
    %v119 = vld [vmem:[#allocation2 + $0xe8] sm:$0xff]
    %v120 = vld [vmem:[#allocation2 + $0xf0] sm:$0xff]
    %v121 = vld [vmem:[#allocation2 + $0xf8] sm:$0xff]
    %v122 = vld [vmem:[#allocation2 + $0x100] sm:$0xff]
    %v123 = vld [vmem:[#allocation2 + $0x108] sm:$0xff]
    %v124 = vld [vmem:[#allocation2 + $0x110] sm:$0xff]
    %v125 = vld [vmem:[#allocation2 + $0x118] sm:$0xff]
    %v126 = vld [vmem:[#allocation2 + $0x120] sm:$0xff]
    %v127 = vld [vmem:[#allocation2 + $0x128] sm:$0xff]
    %v128 = vld [vmem:[#allocation2 + $0x130] sm:$0xff]
    %v129 = vld [vmem:[#allocation2 + $0x138] sm:$0xff]
    %v130 = vld [vmem:[#allocation2 + $0x140] sm:$0xff]
    %v131 = vld [vmem:[#allocation2 + $0x148] sm:$0xff]
    %v132 = vld [vmem:[#allocation2 + $0x150] sm:$0xff]
    %v133 = vld [vmem:[#allocation2 + $0x158] sm:$0xff]
    %v134 = vld [vmem:[#allocation2 + $0x160] sm:$0xff]
    %v135 = vld [vmem:[#allocation2 + $0x168] sm:$0xff]
    %v136 = vld [vmem:[#allocation2 + $0x170] sm:$0xff]
    %v137 = vld [vmem:[#allocation2 + $0x178] sm:$0xff]
    %v138 = vld [vmem:[#allocation2 + $0x180] sm:$0xff]
    %v139 = vld [vmem:[#allocation2 + $0x188] sm:$0xff]
    %v140 = vld [vmem:[#allocation2 + $0x190] sm:$0xff]
    %v141 = vld [vmem:[#allocation2 + $0x198] sm:$0xff]
    %v142 = vld [vmem:[#allocation2 + $0x1a0] sm:$0xff]
    %v143 = vld [vmem:[#allocation2 + $0x1a8] sm:$0xff]
    %v144 = vld [vmem:[#allocation2 + $0x1b0] sm:$0xff]
    %v145 = vld [vmem:[#allocation2 + $0x1b8] sm:$0xff]
    %v146 = vld [vmem:[#allocation2 + $0x1c0] sm:$0xff]
    %v147 = vld [vmem:[#allocation2 + $0x1c8] sm:$0xff]
    %v148 = vld [vmem:[#allocation2 + $0x1d0] sm:$0xff]
    %v149 = vld [vmem:[#allocation2 + $0x1d8] sm:$0xff]
    %v150 = vld [vmem:[#allocation2 + $0x1e0] sm:$0xff]
    %v151 = vld [vmem:[#allocation2 + $0x1e8] sm:$0xff]
    %v152 = vld [vmem:[#allocation2 + $0x1f0] sm:$0xff]
    %v153 = vld [vmem:[#allocation2 + $0x1f8] sm:$0xff]
    %v154 = vld [vmem:[#allocation5] sm:$0xff]
    %v155 = vld [vmem:[#allocation5 + $0x8] sm:$0xff]
    %v156 = vld [vmem:[#allocation5 + $0x10] sm:$0xff]
    %v157 = vld [vmem:[#allocation5 + $0x18] sm:$0xff]
    %v158 = vld [vmem:[#allocation5 + $0x20] sm:$0xff]
    %v159 = vld [vmem:[#allocation5 + $0x28] sm:$0xff]
    %v160 = vld [vmem:[#allocation5 + $0x30] sm:$0xff]
    %v161 = vld [vmem:[#allocation5 + $0x38] sm:$0xff]
    %v162 = vld [vmem:[#allocation5 + $0x40] sm:$0xff]
    %v163 = vld [vmem:[#allocation5 + $0x48] sm:$0xff]
    %v164 = vld [vmem:[#allocation5 + $0x50] sm:$0xff]
    %v165 = vld [vmem:[#allocation5 + $0x58] sm:$0xff]
    %v166 = vld [vmem:[#allocation5 + $0x60] sm:$0xff]
    %v167 = vld [vmem:[#allocation5 + $0x68] sm:$0xff]
    %v168 = vld [vmem:[#allocation5 + $0x70] sm:$0xff]
    %v169 = vld [vmem:[#allocation5 + $0x78] sm:$0xff]
    %v170 = vld [vmem:[#allocation5 + $0x80] sm:$0xff]
    %v171 = vld [vmem:[#allocation5 + $0x88] sm:$0xff]
    %v172 = vld [vmem:[#allocation5 + $0x90] sm:$0xff]
    %v173 = vld [vmem:[#allocation5 + $0x98] sm:$0xff]
    %v174 = vld [vmem:[#allocation5 + $0xa0] sm:$0xff]
    %v175 = vld [vmem:[#allocation5 + $0xa8] sm:$0xff]
    %v176 = vld [vmem:[#allocation5 + $0xb0] sm:$0xff]
    %v177 = vld [vmem:[#allocation5 + $0xb8] sm:$0xff]
    %v178 = vld [vmem:[#allocation5 + $0xc0] sm:$0xff]
    %v179 = vld [vmem:[#allocation5 + $0xc8] sm:$0xff]
    %v180 = vld [vmem:[#allocation5 + $0xd0] sm:$0xff]
    %v181 = vld [vmem:[#allocation5 + $0xd8] sm:$0xff]
    %v182 = vld [vmem:[#allocation5 + $0xe0] sm:$0xff]
    %v183 = vld [vmem:[#allocation5 + $0xe8] sm:$0xff]
    %v184 = vld [vmem:[#allocation5 + $0xf0] sm:$0xff]
    %v185 = vld [vmem:[#allocation5 + $0xf8] sm:$0xff]
    %v186 = vld [vmem:[#allocation5 + $0x100] sm:$0xff]
    %v187 = vld [vmem:[#allocation5 + $0x108] sm:$0xff]
    %v188 = vld [vmem:[#allocation5 + $0x110] sm:$0xff]
    %v189 = vld [vmem:[#allocation5 + $0x118] sm:$0xff]
    %v190 = vld [vmem:[#allocation5 + $0x120] sm:$0xff]
    %v191 = vld [vmem:[#allocation5 + $0x128] sm:$0xff]
    %v192 = vld [vmem:[#allocation5 + $0x130] sm:$0xff]
    %v193 = vld [vmem:[#allocation5 + $0x138] sm:$0xff]
    %v194 = vld [vmem:[#allocation5 + $0x140] sm:$0xff]
    %v195 = vld [vmem:[#allocation5 + $0x148] sm:$0xff]
    %v196 = vld [vmem:[#allocation5 + $0x150] sm:$0xff]
    %v197 = vld [vmem:[#allocation5 + $0x158] sm:$0xff]
    %v198 = vld [vmem:[#allocation5 + $0x160] sm:$0xff]
    %v199 = vld [vmem:[#allocation5 + $0x168] sm:$0xff]
    %v200 = vld [vmem:[#allocation5 + $0x170] sm:$0xff]
    %v201 = vld [vmem:[#allocation5 + $0x178] sm:$0xff]
    %v202 = vld [vmem:[#allocation5 + $0x180] sm:$0xff]
    %v203 = vld [vmem:[#allocation5 + $0x188] sm:$0xff]
    %v204 = vld [vmem:[#allocation5 + $0x190] sm:$0xff]
    %v205 = vld [vmem:[#allocation5 + $0x198] sm:$0xff]
    %v206 = vld [vmem:[#allocation5 + $0x1a0] sm:$0xff]
    %v207 = vld [vmem:[#allocation5 + $0x1a8] sm:$0xff]
    %v208 = vld [vmem:[#allocation5 + $0x1b0] sm:$0xff]
    %v209 = vld [vmem:[#allocation5 + $0x1b8] sm:$0xff]
    %v210 = vld [vmem:[#allocation5 + $0x1c0] sm:$0xff]
    %v211 = vld [vmem:[#allocation5 + $0x1c8] sm:$0xff]
    %v212 = vld [vmem:[#allocation5 + $0x1d0] sm:$0xff]
    %v213 = vld [vmem:[#allocation5 + $0x1d8] sm:$0xff]
    %v214 = vld [vmem:[#allocation5 + $0x1e0] sm:$0xff]
    %v215 = vld [vmem:[#allocation5 + $0x1e8] sm:$0xff]
    %v216 = vld [vmem:[#allocation5 + $0x1f0] sm:$0xff]
    %v217 = vld [vmem:[#allocation5 + $0x1f8] sm:$0xff]
    %v282 = vunpack.c.l.b16 %v154
    %v283 = vunpack.c.h.b16 %v154
    %v284 = vunpack.c.l.b16 %v155
    %v285 = vunpack.c.h.b16 %v155
    %v286 = vunpack.c.l.b16 %v156
    %v287 = vunpack.c.h.b16 %v156
    %v288 = vunpack.c.l.b16 %v157
    %v289 = vunpack.c.h.b16 %v157
    %v290 = vunpack.c.l.b16 %v158
    %v291 = vunpack.c.h.b16 %v158
    %v292 = vunpack.c.l.b16 %v159
    %v293 = vunpack.c.h.b16 %v159
    %v294 = vunpack.c.l.b16 %v160
    %v295 = vunpack.c.h.b16 %v160
    %v296 = vunpack.c.l.b16 %v161
    %v297 = vunpack.c.h.b16 %v161
    %v298 = vunpack.c.l.b16 %v162
    %v299 = vunpack.c.h.b16 %v162
    %v300 = vunpack.c.l.b16 %v163
    %v301 = vunpack.c.h.b16 %v163
    %v302 = vunpack.c.l.b16 %v164
    %v303 = vunpack.c.h.b16 %v164
    %v304 = vunpack.c.l.b16 %v165
    %v305 = vunpack.c.h.b16 %v165
    %v306 = vunpack.c.l.b16 %v166
    %v307 = vunpack.c.h.b16 %v166
    %v308 = vunpack.c.l.b16 %v167
    %v309 = vunpack.c.h.b16 %v167
    %v310 = vunpack.c.l.b16 %v168
    %v311 = vunpack.c.h.b16 %v168
    %v312 = vunpack.c.l.b16 %v169
    %v313 = vunpack.c.h.b16 %v169
    %v314 = vunpack.c.l.b16 %v170
    %v315 = vunpack.c.h.b16 %v170
    %v316 = vunpack.c.l.b16 %v171
    %v317 = vunpack.c.h.b16 %v171
    %v318 = vunpack.c.l.b16 %v172
    %v319 = vunpack.c.h.b16 %v172
    %v320 = vunpack.c.l.b16 %v173
    %v321 = vunpack.c.h.b16 %v173
    %v322 = vunpack.c.l.b16 %v174
    %v323 = vunpack.c.h.b16 %v174
    %v324 = vunpack.c.l.b16 %v175
    %v325 = vunpack.c.h.b16 %v175
    %v326 = vunpack.c.l.b16 %v176
    %v327 = vunpack.c.h.b16 %v176
    %v328 = vunpack.c.l.b16 %v177
    %v329 = vunpack.c.h.b16 %v177
    %v330 = vunpack.c.l.b16 %v178
    %v331 = vunpack.c.h.b16 %v178
    %v332 = vunpack.c.l.b16 %v179
    %v333 = vunpack.c.h.b16 %v179
    %v334 = vunpack.c.l.b16 %v180
    %v335 = vunpack.c.h.b16 %v180
    %v336 = vunpack.c.l.b16 %v181
    %v337 = vunpack.c.h.b16 %v181
    %v338 = vunpack.c.l.b16 %v182
    %v339 = vunpack.c.h.b16 %v182
    %v340 = vunpack.c.l.b16 %v183
    %v341 = vunpack.c.h.b16 %v183
    %v342 = vunpack.c.l.b16 %v184
    %v343 = vunpack.c.h.b16 %v184
    %v344 = vunpack.c.l.b16 %v185
    %v345 = vunpack.c.h.b16 %v185
    %v346 = vunpack.c.l.b16 %v186
    %v347 = vunpack.c.h.b16 %v186
    %v348 = vunpack.c.l.b16 %v187
    %v349 = vunpack.c.h.b16 %v187
    %v350 = vunpack.c.l.b16 %v188
    %v351 = vunpack.c.h.b16 %v188
    %v352 = vunpack.c.l.b16 %v189
    %v353 = vunpack.c.h.b16 %v189
    %v354 = vunpack.c.l.b16 %v190
    %v355 = vunpack.c.h.b16 %v190
    %v356 = vunpack.c.l.b16 %v191
    %v357 = vunpack.c.h.b16 %v191
    %v358 = vunpack.c.l.b16 %v192
    %v359 = vunpack.c.h.b16 %v192
    %v360 = vunpack.c.l.b16 %v193
    %v361 = vunpack.c.h.b16 %v193
    %v362 = vunpack.c.l.b16 %v194
    %v363 = vunpack.c.h.b16 %v194
    %v364 = vunpack.c.l.b16 %v195
    %v365 = vunpack.c.h.b16 %v195
    %v366 = vunpack.c.l.b16 %v196
    %v367 = vunpack.c.h.b16 %v196
    %v368 = vunpack.c.l.b16 %v197
    %v369 = vunpack.c.h.b16 %v197
    %v370 = vunpack.c.l.b16 %v198
    %v371 = vunpack.c.h.b16 %v198
    %v372 = vunpack.c.l.b16 %v199
    %v373 = vunpack.c.h.b16 %v199
    %v374 = vunpack.c.l.b16 %v200
    %v375 = vunpack.c.h.b16 %v200
    %v376 = vunpack.c.l.b16 %v201
    %v377 = vunpack.c.h.b16 %v201
    %v378 = vunpack.c.l.b16 %v202
    %v379 = vunpack.c.h.b16 %v202
    %v380 = vunpack.c.l.b16 %v203
    %v381 = vunpack.c.h.b16 %v203
    %v382 = vunpack.c.l.b16 %v204
    %v383 = vunpack.c.h.b16 %v204
    %v384 = vunpack.c.l.b16 %v205
    %v385 = vunpack.c.h.b16 %v205
    %v386 = vunpack.c.l.b16 %v206
    %v387 = vunpack.c.h.b16 %v206
    %v388 = vunpack.c.l.b16 %v207
    %v389 = vunpack.c.h.b16 %v207
    %v390 = vunpack.c.l.b16 %v208
    %v391 = vunpack.c.h.b16 %v208
    %v392 = vunpack.c.l.b16 %v209
    %v393 = vunpack.c.h.b16 %v209
    %v394 = vunpack.c.l.b16 %v210
    %v395 = vunpack.c.h.b16 %v210
    %v396 = vunpack.c.l.b16 %v211
    %v397 = vunpack.c.h.b16 %v211
    %v398 = vunpack.c.l.b16 %v212
    %v399 = vunpack.c.h.b16 %v212
    %v400 = vunpack.c.l.b16 %v213
    %v401 = vunpack.c.h.b16 %v213
    %v402 = vunpack.c.l.b16 %v214
    %v403 = vunpack.c.h.b16 %v214
    %v404 = vunpack.c.l.b16 %v215
    %v405 = vunpack.c.h.b16 %v215
    %v406 = vunpack.c.l.b16 %v216
    %v407 = vunpack.c.h.b16 %v216
    %v408 = vunpack.c.l.b16 %v217
    %v409 = vunpack.c.h.b16 %v217
    %v410 = vpack.c.b16 %v284, %v282
    %v411 = vpack.c.b16 %v285, %v283
    %v412 = vpack.c.b16 %v288, %v286
    %v413 = vpack.c.b16 %v289, %v287
    %v414 = vpack.c.b16 %v292, %v290
    %v415 = vpack.c.b16 %v293, %v291
    %v416 = vpack.c.b16 %v296, %v294
    %v417 = vpack.c.b16 %v297, %v295
    %v418 = vpack.c.b16 %v300, %v298
    %v419 = vpack.c.b16 %v301, %v299
    %v420 = vpack.c.b16 %v304, %v302
    %v421 = vpack.c.b16 %v305, %v303
    %v422 = vpack.c.b16 %v308, %v306
    %v423 = vpack.c.b16 %v309, %v307
    %v424 = vpack.c.b16 %v312, %v310
    %v425 = vpack.c.b16 %v313, %v311
    %v426 = vpack.c.b16 %v316, %v314
    %v427 = vpack.c.b16 %v317, %v315
    %v428 = vpack.c.b16 %v320, %v318
    %v429 = vpack.c.b16 %v321, %v319
    %v430 = vpack.c.b16 %v324, %v322
    %v431 = vpack.c.b16 %v325, %v323
    %v432 = vpack.c.b16 %v328, %v326
    %v433 = vpack.c.b16 %v329, %v327
    %v434 = vpack.c.b16 %v332, %v330
    %v435 = vpack.c.b16 %v333, %v331
    %v436 = vpack.c.b16 %v336, %v334
    %v437 = vpack.c.b16 %v337, %v335
    %v438 = vpack.c.b16 %v340, %v338
    %v439 = vpack.c.b16 %v341, %v339
    %v440 = vpack.c.b16 %v344, %v342
    %v441 = vpack.c.b16 %v345, %v343
    %v442 = vpack.c.b16 %v348, %v346
    %v443 = vpack.c.b16 %v349, %v347
    %v444 = vpack.c.b16 %v352, %v350
    %v445 = vpack.c.b16 %v353, %v351
    %v446 = vpack.c.b16 %v356, %v354
    %v447 = vpack.c.b16 %v357, %v355
    %v448 = vpack.c.b16 %v360, %v358
    %v449 = vpack.c.b16 %v361, %v359
    %v450 = vpack.c.b16 %v364, %v362
    %v451 = vpack.c.b16 %v365, %v363
    %v452 = vpack.c.b16 %v368, %v366
    %v453 = vpack.c.b16 %v369, %v367
    %v454 = vpack.c.b16 %v372, %v370
    %v455 = vpack.c.b16 %v373, %v371
    %v456 = vpack.c.b16 %v376, %v374
    %v457 = vpack.c.b16 %v377, %v375
    %v458 = vpack.c.b16 %v380, %v378
    %v459 = vpack.c.b16 %v381, %v379
    %v460 = vpack.c.b16 %v384, %v382
    %v461 = vpack.c.b16 %v385, %v383
    %v462 = vpack.c.b16 %v388, %v386
    %v463 = vpack.c.b16 %v389, %v387
    %v464 = vpack.c.b16 %v392, %v390
    %v465 = vpack.c.b16 %v393, %v391
    %v466 = vpack.c.b16 %v396, %v394
    %v467 = vpack.c.b16 %v397, %v395
    %v468 = vpack.c.b16 %v400, %v398
    %v469 = vpack.c.b16 %v401, %v399
    %v470 = vpack.c.b16 %v404, %v402
    %v471 = vpack.c.b16 %v405, %v403
    %v472 = vpack.c.b16 %v408, %v406
    %v473 = vpack.c.b16 %v409, %v407
    %538 = vmatprep.subr.bf16.mxu0 %v425
    %539 = vmatpush1.bf16.msra.mxu0 %v424
    %540 = vmatprep.subr.bf16.mxu0 %v423
    %541 = vmatpush1.bf16.msra.mxu0 %v422
    %542 = vmatprep.subr.bf16.mxu0 %v421
    %543 = vmatpush1.bf16.msra.mxu0 %v420
    %544 = vmatprep.subr.bf16.mxu0 %v419
    %545 = vmatpush1.bf16.msra.mxu0 %v418
    %546 = vmatprep.subr.bf16.mxu0 %v417
    %547 = vmatpush1.bf16.msra.mxu0 %v416
    %548 = vmatprep.subr.bf16.mxu0 %v415
    %549 = vmatpush1.bf16.msra.mxu0 %v414
    %550 = vmatprep.subr.bf16.mxu0 %v413
    %551 = vmatpush1.bf16.msra.mxu0 %v412
    %552 = vmatprep.subr.bf16.mxu0 %v411
    %553 = vmatpush1.bf16.msra.mxu0 %v410
    %554 = vmatprep.subr.bf16.mxu0 %v441
    %555 = vmatpush2.bf16.msra.mxu0 %v440
    %556 = vmatprep.subr.bf16.mxu0 %v439
    %557 = vmatpush2.bf16.msra.mxu0 %v438
    %558 = vmatprep.subr.bf16.mxu0 %v437
    %559 = vmatpush2.bf16.msra.mxu0 %v436
    %560 = vmatprep.subr.bf16.mxu0 %v435
    %561 = vmatpush2.bf16.msra.mxu0 %v434
    %562 = vmatprep.subr.bf16.mxu0 %v433
    %563 = vmatpush2.bf16.msra.mxu0 %v432
    %564 = vmatprep.subr.bf16.mxu0 %v431
    %565 = vmatpush2.bf16.msra.mxu0 %v430
    %566 = vmatprep.subr.bf16.mxu0 %v429
    %567 = vmatpush2.bf16.msra.mxu0 %v428
    %568 = vmatprep.subr.bf16.mxu0 %v427
    %569 = vmatpush2.bf16.msra.mxu0 %v426
    %570 = vmatprep.mubr.bf16.mxu0 %v87
    %571 = vmatmul.mubr.bf16.gmra.mxu0 %v86
    %v572 = vpop.f32.mrf.mxu0
    %v573 = vadd.f32 0.0, %v572
    %v574 = vpop.f32.mrf.mxu0
    %v575 = vadd.f32 0.0, %v574
    %v576 = vpop.f32.mrf.mxu0
    %v577 = vpop.f32.mrf.mxu0
    %578 = vdwg.mxu0
    %579 = vmatprep.subr.bf16.mxu0 %v457
    %580 = vmatpush1.bf16.msra.mxu0 %v456
    %581 = vmatprep.subr.bf16.mxu0 %v455
    %582 = vmatpush1.bf16.msra.mxu0 %v454
    %583 = vmatprep.subr.bf16.mxu0 %v453
    %584 = vmatpush1.bf16.msra.mxu0 %v452
    %585 = vmatprep.subr.bf16.mxu0 %v451
    %586 = vmatpush1.bf16.msra.mxu0 %v450
    %587 = vmatprep.subr.bf16.mxu0 %v449
    %588 = vmatpush1.bf16.msra.mxu0 %v448
    %589 = vmatprep.subr.bf16.mxu0 %v447
    %590 = vmatpush1.bf16.msra.mxu0 %v446
    %591 = vmatprep.subr.bf16.mxu0 %v445
    %592 = vmatpush1.bf16.msra.mxu0 %v444
    %593 = vmatprep.subr.bf16.mxu0 %v443
    %594 = vmatpush1.bf16.msra.mxu0 %v442
    %595 = vmatprep.subr.bf16.mxu0 %v473
    %596 = vmatpush2.bf16.msra.mxu0 %v472
    %597 = vmatprep.subr.bf16.mxu0 %v471
    %598 = vmatpush2.bf16.msra.mxu0 %v470
    %599 = vmatprep.subr.bf16.mxu0 %v469
    %600 = vmatpush2.bf16.msra.mxu0 %v468
    %601 = vmatprep.subr.bf16.mxu0 %v467
    %602 = vmatpush2.bf16.msra.mxu0 %v466
    %603 = vmatprep.subr.bf16.mxu0 %v465
    %604 = vmatpush2.bf16.msra.mxu0 %v464
    %605 = vmatprep.subr.bf16.mxu0 %v463
    %606 = vmatpush2.bf16.msra.mxu0 %v462
    %607 = vmatprep.subr.bf16.mxu0 %v461
    %608 = vmatpush2.bf16.msra.mxu0 %v460
    %609 = vmatprep.subr.bf16.mxu0 %v459
    %610 = vmatpush2.bf16.msra.mxu0 %v458
    %611 = vmatprep.mubr.bf16.mxu0 %v89
    %612 = vmatmul.mubr.bf16.gmra.mxu0 %v88
    %v613 = vpop.f32.mrf.mxu0
    %v614 = vadd.f32 %v573, %v613
    %v615 = vpop.f32.mrf.mxu0
    %v616 = vadd.f32 %v575, %v615
    %v617 = vpop.f32.mrf.mxu0
    %v618 = vpop.f32.mrf.mxu0
    %619 = vdwg.mxu0
    %v684 = vunpack.c.l.b16 %v90
    %v685 = vunpack.c.h.b16 %v90
    %v686 = vunpack.c.l.b16 %v91
    %v687 = vunpack.c.h.b16 %v91
    %v688 = vunpack.c.l.b16 %v92
    %v689 = vunpack.c.h.b16 %v92
    %v690 = vunpack.c.l.b16 %v93
    %v691 = vunpack.c.h.b16 %v93
    %v692 = vunpack.c.l.b16 %v94
    %v693 = vunpack.c.h.b16 %v94
    %v694 = vunpack.c.l.b16 %v95
    %v695 = vunpack.c.h.b16 %v95
    %v696 = vunpack.c.l.b16 %v96
    %v697 = vunpack.c.h.b16 %v96
    %v698 = vunpack.c.l.b16 %v97
    %v699 = vunpack.c.h.b16 %v97
    %v700 = vunpack.c.l.b16 %v98
    %v701 = vunpack.c.h.b16 %v98
    %v702 = vunpack.c.l.b16 %v99
    %v703 = vunpack.c.h.b16 %v99
    %v704 = vunpack.c.l.b16 %v100
    %v705 = vunpack.c.h.b16 %v100
    %v706 = vunpack.c.l.b16 %v101
    %v707 = vunpack.c.h.b16 %v101
    %v708 = vunpack.c.l.b16 %v102
    %v709 = vunpack.c.h.b16 %v102
    %v710 = vunpack.c.l.b16 %v103
    %v711 = vunpack.c.h.b16 %v103
    %v712 = vunpack.c.l.b16 %v104
    %v713 = vunpack.c.h.b16 %v104
    %v714 = vunpack.c.l.b16 %v105
    %v715 = vunpack.c.h.b16 %v105
    %v716 = vunpack.c.l.b16 %v106
    %v717 = vunpack.c.h.b16 %v106
    %v718 = vunpack.c.l.b16 %v107
    %v719 = vunpack.c.h.b16 %v107
    %v720 = vunpack.c.l.b16 %v108
    %v721 = vunpack.c.h.b16 %v108
    %v722 = vunpack.c.l.b16 %v109
    %v723 = vunpack.c.h.b16 %v109
    %v724 = vunpack.c.l.b16 %v110
    %v725 = vunpack.c.h.b16 %v110
    %v726 = vunpack.c.l.b16 %v111
    %v727 = vunpack.c.h.b16 %v111
    %v728 = vunpack.c.l.b16 %v112
    %v729 = vunpack.c.h.b16 %v112
    %v730 = vunpack.c.l.b16 %v113
    %v731 = vunpack.c.h.b16 %v113
    %v732 = vunpack.c.l.b16 %v114
    %v733 = vunpack.c.h.b16 %v114
    %v734 = vunpack.c.l.b16 %v115
    %v735 = vunpack.c.h.b16 %v115
    %v736 = vunpack.c.l.b16 %v116
    %v737 = vunpack.c.h.b16 %v116
    %v738 = vunpack.c.l.b16 %v117
    %v739 = vunpack.c.h.b16 %v117
    %v740 = vunpack.c.l.b16 %v118
    %v741 = vunpack.c.h.b16 %v118
    %v742 = vunpack.c.l.b16 %v119
    %v743 = vunpack.c.h.b16 %v119
    %v744 = vunpack.c.l.b16 %v120
    %v745 = vunpack.c.h.b16 %v120
    %v746 = vunpack.c.l.b16 %v121
    %v747 = vunpack.c.h.b16 %v121
    %v748 = vunpack.c.l.b16 %v122
    %v749 = vunpack.c.h.b16 %v122
    %v750 = vunpack.c.l.b16 %v123
    %v751 = vunpack.c.h.b16 %v123
    %v752 = vunpack.c.l.b16 %v124
    %v753 = vunpack.c.h.b16 %v124
    %v754 = vunpack.c.l.b16 %v125
    %v755 = vunpack.c.h.b16 %v125
    %v756 = vunpack.c.l.b16 %v126
    %v757 = vunpack.c.h.b16 %v126
    %v758 = vunpack.c.l.b16 %v127
    %v759 = vunpack.c.h.b16 %v127
    %v760 = vunpack.c.l.b16 %v128
    %v761 = vunpack.c.h.b16 %v128
    %v762 = vunpack.c.l.b16 %v129
    %v763 = vunpack.c.h.b16 %v129
    %v764 = vunpack.c.l.b16 %v130
    %v765 = vunpack.c.h.b16 %v130
    %v766 = vunpack.c.l.b16 %v131
    %v767 = vunpack.c.h.b16 %v131
    %v768 = vunpack.c.l.b16 %v132
    %v769 = vunpack.c.h.b16 %v132
    %v770 = vunpack.c.l.b16 %v133
    %v771 = vunpack.c.h.b16 %v133
    %v772 = vunpack.c.l.b16 %v134
    %v773 = vunpack.c.h.b16 %v134
    %v774 = vunpack.c.l.b16 %v135
    %v775 = vunpack.c.h.b16 %v135
    %v776 = vunpack.c.l.b16 %v136
    %v777 = vunpack.c.h.b16 %v136
    %v778 = vunpack.c.l.b16 %v137
    %v779 = vunpack.c.h.b16 %v137
    %v780 = vunpack.c.l.b16 %v138
    %v781 = vunpack.c.h.b16 %v138
    %v782 = vunpack.c.l.b16 %v139
    %v783 = vunpack.c.h.b16 %v139
    %v784 = vunpack.c.l.b16 %v140
    %v785 = vunpack.c.h.b16 %v140
    %v786 = vunpack.c.l.b16 %v141
    %v787 = vunpack.c.h.b16 %v141
    %v788 = vunpack.c.l.b16 %v142
    %v789 = vunpack.c.h.b16 %v142
    %v790 = vunpack.c.l.b16 %v143
    %v791 = vunpack.c.h.b16 %v143
    %v792 = vunpack.c.l.b16 %v144
    %v793 = vunpack.c.h.b16 %v144
    %v794 = vunpack.c.l.b16 %v145
    %v795 = vunpack.c.h.b16 %v145
    %v796 = vunpack.c.l.b16 %v146
    %v797 = vunpack.c.h.b16 %v146
    %v798 = vunpack.c.l.b16 %v147
    %v799 = vunpack.c.h.b16 %v147
    %v800 = vunpack.c.l.b16 %v148
    %v801 = vunpack.c.h.b16 %v148
    %v802 = vunpack.c.l.b16 %v149
    %v803 = vunpack.c.h.b16 %v149
    %v804 = vunpack.c.l.b16 %v150
    %v805 = vunpack.c.h.b16 %v150
    %v806 = vunpack.c.l.b16 %v151
    %v807 = vunpack.c.h.b16 %v151
    %v808 = vunpack.c.l.b16 %v152
    %v809 = vunpack.c.h.b16 %v152
    %v810 = vunpack.c.l.b16 %v153
    %v811 = vunpack.c.h.b16 %v153
    %v812 = vpack.c.b16 %v686, %v684
    %v813 = vpack.c.b16 %v687, %v685
    %v814 = vpack.c.b16 %v690, %v688
    %v815 = vpack.c.b16 %v691, %v689
    %v816 = vpack.c.b16 %v694, %v692
    %v817 = vpack.c.b16 %v695, %v693
    %v818 = vpack.c.b16 %v698, %v696
    %v819 = vpack.c.b16 %v699, %v697
    %v820 = vpack.c.b16 %v702, %v700
    %v821 = vpack.c.b16 %v703, %v701
    %v822 = vpack.c.b16 %v706, %v704
    %v823 = vpack.c.b16 %v707, %v705
    %v824 = vpack.c.b16 %v710, %v708
    %v825 = vpack.c.b16 %v711, %v709
    %v826 = vpack.c.b16 %v714, %v712
    %v827 = vpack.c.b16 %v715, %v713
    %v828 = vpack.c.b16 %v718, %v716
    %v829 = vpack.c.b16 %v719, %v717
    %v830 = vpack.c.b16 %v722, %v720
    %v831 = vpack.c.b16 %v723, %v721
    %v832 = vpack.c.b16 %v726, %v724
    %v833 = vpack.c.b16 %v727, %v725
    %v834 = vpack.c.b16 %v730, %v728
    %v835 = vpack.c.b16 %v731, %v729
    %v836 = vpack.c.b16 %v734, %v732
    %v837 = vpack.c.b16 %v735, %v733
    %v838 = vpack.c.b16 %v738, %v736
    %v839 = vpack.c.b16 %v739, %v737
    %v840 = vpack.c.b16 %v742, %v740
    %v841 = vpack.c.b16 %v743, %v741
    %v842 = vpack.c.b16 %v746, %v744
    %v843 = vpack.c.b16 %v747, %v745
    %v844 = vpack.c.b16 %v750, %v748
    %v845 = vpack.c.b16 %v751, %v749
    %v846 = vpack.c.b16 %v754, %v752
    %v847 = vpack.c.b16 %v755, %v753
    %v848 = vpack.c.b16 %v758, %v756
    %v849 = vpack.c.b16 %v759, %v757
    %v850 = vpack.c.b16 %v762, %v760
    %v851 = vpack.c.b16 %v763, %v761
    %v852 = vpack.c.b16 %v766, %v764
    %v853 = vpack.c.b16 %v767, %v765
    %v854 = vpack.c.b16 %v770, %v768
    %v855 = vpack.c.b16 %v771, %v769
    %v856 = vpack.c.b16 %v774, %v772
    %v857 = vpack.c.b16 %v775, %v773
    %v858 = vpack.c.b16 %v778, %v776
    %v859 = vpack.c.b16 %v779, %v777
    %v860 = vpack.c.b16 %v782, %v780
    %v861 = vpack.c.b16 %v783, %v781
    %v862 = vpack.c.b16 %v786, %v784
    %v863 = vpack.c.b16 %v787, %v785
    %v864 = vpack.c.b16 %v790, %v788
    %v865 = vpack.c.b16 %v791, %v789
    %v866 = vpack.c.b16 %v794, %v792
    %v867 = vpack.c.b16 %v795, %v793
    %v868 = vpack.c.b16 %v798, %v796
    %v869 = vpack.c.b16 %v799, %v797
    %v870 = vpack.c.b16 %v802, %v800
    %v871 = vpack.c.b16 %v803, %v801
    %v872 = vpack.c.b16 %v806, %v804
    %v873 = vpack.c.b16 %v807, %v805
    %v874 = vpack.c.b16 %v810, %v808
    %v875 = vpack.c.b16 %v811, %v809
    %940 = vmatprep.subr.bf16.mxu0 %v827
    %941 = vmatpush1.bf16.msra.mxu0 %v826
    %942 = vmatprep.subr.bf16.mxu0 %v825
    %943 = vmatpush1.bf16.msra.mxu0 %v824
    %944 = vmatprep.subr.bf16.mxu0 %v823
    %945 = vmatpush1.bf16.msra.mxu0 %v822
    %946 = vmatprep.subr.bf16.mxu0 %v821
    %947 = vmatpush1.bf16.msra.mxu0 %v820
    %948 = vmatprep.subr.bf16.mxu0 %v819
    %949 = vmatpush1.bf16.msra.mxu0 %v818
    %950 = vmatprep.subr.bf16.mxu0 %v817
    %951 = vmatpush1.bf16.msra.mxu0 %v816
    %952 = vmatprep.subr.bf16.mxu0 %v815
    %953 = vmatpush1.bf16.msra.mxu0 %v814
    %954 = vmatprep.subr.bf16.mxu0 %v813
    %955 = vmatpush1.bf16.msra.mxu0 %v812
    %956 = vmatprep.subr.bf16.mxu0 %v843
    %957 = vmatpush2.bf16.msra.mxu0 %v842
    %958 = vmatprep.subr.bf16.mxu0 %v841
    %959 = vmatpush2.bf16.msra.mxu0 %v840
    %960 = vmatprep.subr.bf16.mxu0 %v839
    %961 = vmatpush2.bf16.msra.mxu0 %v838
    %962 = vmatprep.subr.bf16.mxu0 %v837
    %963 = vmatpush2.bf16.msra.mxu0 %v836
    %964 = vmatprep.subr.bf16.mxu0 %v835
    %965 = vmatpush2.bf16.msra.mxu0 %v834
    %966 = vmatprep.subr.bf16.mxu0 %v833
    %967 = vmatpush2.bf16.msra.mxu0 %v832
    %968 = vmatprep.subr.bf16.mxu0 %v831
    %969 = vmatpush2.bf16.msra.mxu0 %v830
    %970 = vmatprep.subr.bf16.mxu0 %v829
    %971 = vmatpush2.bf16.msra.mxu0 %v828
    %972 = vmatprep.mubr.bf16.mxu0 %v79
    %973 = vmatmul.mubr.bf16.gmra.mxu0 %v78
    %v974 = vpop.f32.mrf.mxu0
    %v975 = vadd.f32 %v614, %v974
    %v976 = vpop.f32.mrf.mxu0
    %v977 = vadd.f32 %v616, %v976
    %v978 = vpop.f32.mrf.mxu0
    %v979 = vpop.f32.mrf.mxu0
    %980 = vdwg.mxu0
    %981 = vmatprep.subr.bf16.mxu0 %v859
    %982 = vmatpush1.bf16.msra.mxu0 %v858
    %983 = vmatprep.subr.bf16.mxu0 %v857
    %984 = vmatpush1.bf16.msra.mxu0 %v856
    %985 = vmatprep.subr.bf16.mxu0 %v855
    %986 = vmatpush1.bf16.msra.mxu0 %v854
    %987 = vmatprep.subr.bf16.mxu0 %v853
    %988 = vmatpush1.bf16.msra.mxu0 %v852
    %989 = vmatprep.subr.bf16.mxu0 %v851
    %990 = vmatpush1.bf16.msra.mxu0 %v850
    %991 = vmatprep.subr.bf16.mxu0 %v849
    %992 = vmatpush1.bf16.msra.mxu0 %v848
    %993 = vmatprep.subr.bf16.mxu0 %v847
    %994 = vmatpush1.bf16.msra.mxu0 %v846
    %995 = vmatprep.subr.bf16.mxu0 %v845
    %996 = vmatpush1.bf16.msra.mxu0 %v844
    %997 = vmatprep.subr.bf16.mxu0 %v875
    %998 = vmatpush2.bf16.msra.mxu0 %v874
    %999 = vmatprep.subr.bf16.mxu0 %v873
    %1000 = vmatpush2.bf16.msra.mxu0 %v872
    %1001 = vmatprep.subr.bf16.mxu0 %v871
    %1002 = vmatpush2.bf16.msra.mxu0 %v870
    %1003 = vmatprep.subr.bf16.mxu0 %v869
    %1004 = vmatpush2.bf16.msra.mxu0 %v868
    %1005 = vmatprep.subr.bf16.mxu0 %v867
    %1006 = vmatpush2.bf16.msra.mxu0 %v866
    %1007 = vmatprep.subr.bf16.mxu0 %v865
    %1008 = vmatpush2.bf16.msra.mxu0 %v864
    %1009 = vmatprep.subr.bf16.mxu0 %v863
    %1010 = vmatpush2.bf16.msra.mxu0 %v862
    %1011 = vmatprep.subr.bf16.mxu0 %v861
    %1012 = vmatpush2.bf16.msra.mxu0 %v860
    %1013 = vmatprep.mubr.bf16.mxu0 %v81
    %1014 = vmatmul.mubr.bf16.gmra.mxu0 %v80
    %v1015 = vpop.f32.mrf.mxu0
    %v1016 = vadd.f32 %v975, %v1015
    %v1017 = vpop.f32.mrf.mxu0
    %v1018 = vadd.f32 %v977, %v1017
    %v1019 = vpop.f32.mrf.mxu0
    %v1020 = vpop.f32.mrf.mxu0
    %1021 = vdwg.mxu0
    %v1022 = vld [vmem:[%s2] sm:$0xff]
    %v1023 = vld [vmem:[%s5] sm:$0x3]
    %1025 = vset.pattern.permute.xlu0 0
    %1026 = vperm.xlu0 %1025, %v1022
    %v1027 = vpop.permute.xlu0 %1026
    %v1030 = vlaneseq
    %v1031 = vshrl.u32 %v1030, 7
    %v1032 = vsub.s32 0, %v1031
    %v1033 = vrot.slane %v1023, %v1032
    %v1034 = vlaneseq
    %v1035 = vshrl.u32 %v1034, 7
    %v1036 = vsub.s32 1, %v1035
    %v1037 = vrot.slane %v1023, %v1036
    %v1040 = vmul.f32 %v1027, %v1033
    %v1041 = vmul.f32 %v1027, %v1037
    %v1042 = vadd.f32 %v1016, %v1040
    %v1043 = vadd.f32 %v1018, %v1041
    %v1044 = vld [vmem:[%s6] sm:$0x3]
    %v1046 = vlaneseq
    %v1047 = vshrl.u32 %v1046, 7
    %v1048 = vsub.s32 0, %v1047
    %v1049 = vrot.slane %v1044, %v1048
    %v1050 = vlaneseq
    %v1051 = vshrl.u32 %v1050, 7
    %v1052 = vsub.s32 1, %v1051
    %v1053 = vrot.slane %v1044, %v1052
    %v1056 = vadd.f32 %v1042, %v1049
    %v1057 = vadd.f32 %v1043, %v1053
    %vm1058 = vcmp.gt.f32.partialorder %v1056, 0.0
    %vm1059 = vcmp.gt.f32.partialorder %v1057, 0.0
    %v1060 = vmul.f32 %v1056, 0.01
    %v1061 = vmul.f32 %v1057, 0.01
    %v1062 = vsel %vm1058, %v1056, %v1060
    %v1063 = vsel %vm1059, %v1057, %v1061
    %v1064 = vpack.c.bf16 %v1062, %v1062
    %v1065 = vpack.c.bf16 %v1063, %v1063
    %v1066 = vld [vmem:[#allocation7] sm:$0xff]
    %v1067 = vld [vmem:[#allocation7 + $0x8] sm:$0xff]
    %v1068 = vld [vmem:[#allocation7 + $0x10] sm:$0xff]
    %v1069 = vld [vmem:[#allocation7 + $0x18] sm:$0xff]
    %v1070 = vld [vmem:[#allocation7 + $0x20] sm:$0xff]
    %v1071 = vld [vmem:[#allocation7 + $0x28] sm:$0xff]
    %v1072 = vld [vmem:[#allocation7 + $0x30] sm:$0xff]
    %v1073 = vld [vmem:[#allocation7 + $0x38] sm:$0xff]
    %v1074 = vld [vmem:[#allocation7 + $0x40] sm:$0xff]
    %v1075 = vld [vmem:[#allocation7 + $0x48] sm:$0xff]
    %v1076 = vld [vmem:[#allocation7 + $0x50] sm:$0xff]
    %v1077 = vld [vmem:[#allocation7 + $0x58] sm:$0xff]
    %v1078 = vld [vmem:[#allocation7 + $0x60] sm:$0xff]
    %v1079 = vld [vmem:[#allocation7 + $0x68] sm:$0xff]
    %v1080 = vld [vmem:[#allocation7 + $0x70] sm:$0xff]
    %v1081 = vld [vmem:[#allocation7 + $0x78] sm:$0xff]
    %v1082 = vld [vmem:[#allocation7 + $0x80] sm:$0xff]
    %v1083 = vld [vmem:[#allocation7 + $0x88] sm:$0xff]
    %v1084 = vld [vmem:[#allocation7 + $0x90] sm:$0xff]
    %v1085 = vld [vmem:[#allocation7 + $0x98] sm:$0xff]
    %v1086 = vld [vmem:[#allocation7 + $0xa0] sm:$0xff]
    %v1087 = vld [vmem:[#allocation7 + $0xa8] sm:$0xff]
    %v1088 = vld [vmem:[#allocation7 + $0xb0] sm:$0xff]
    %v1089 = vld [vmem:[#allocation7 + $0xb8] sm:$0xff]
    %v1090 = vld [vmem:[#allocation7 + $0xc0] sm:$0xff]
    %v1091 = vld [vmem:[#allocation7 + $0xc8] sm:$0xff]
    %v1092 = vld [vmem:[#allocation7 + $0xd0] sm:$0xff]
    %v1093 = vld [vmem:[#allocation7 + $0xd8] sm:$0xff]
    %v1094 = vld [vmem:[#allocation7 + $0xe0] sm:$0xff]
    %v1095 = vld [vmem:[#allocation7 + $0xe8] sm:$0xff]
    %v1096 = vld [vmem:[#allocation7 + $0xf0] sm:$0xff]
    %v1097 = vld [vmem:[#allocation7 + $0xf8] sm:$0xff]
    %v1098 = vld [vmem:[#allocation7 + $0x100] sm:$0xff]
    %v1099 = vld [vmem:[#allocation7 + $0x108] sm:$0xff]
    %v1100 = vld [vmem:[#allocation7 + $0x110] sm:$0xff]
    %v1101 = vld [vmem:[#allocation7 + $0x118] sm:$0xff]
    %v1102 = vld [vmem:[#allocation7 + $0x120] sm:$0xff]
    %v1103 = vld [vmem:[#allocation7 + $0x128] sm:$0xff]
    %v1104 = vld [vmem:[#allocation7 + $0x130] sm:$0xff]
    %v1105 = vld [vmem:[#allocation7 + $0x138] sm:$0xff]
    %v1106 = vld [vmem:[#allocation7 + $0x140] sm:$0xff]
    %v1107 = vld [vmem:[#allocation7 + $0x148] sm:$0xff]
    %v1108 = vld [vmem:[#allocation7 + $0x150] sm:$0xff]
    %v1109 = vld [vmem:[#allocation7 + $0x158] sm:$0xff]
    %v1110 = vld [vmem:[#allocation7 + $0x160] sm:$0xff]
    %v1111 = vld [vmem:[#allocation7 + $0x168] sm:$0xff]
    %v1112 = vld [vmem:[#allocation7 + $0x170] sm:$0xff]
    %v1113 = vld [vmem:[#allocation7 + $0x178] sm:$0xff]
    %v1114 = vld [vmem:[#allocation7 + $0x180] sm:$0xff]
    %v1115 = vld [vmem:[#allocation7 + $0x188] sm:$0xff]
    %v1116 = vld [vmem:[#allocation7 + $0x190] sm:$0xff]
    %v1117 = vld [vmem:[#allocation7 + $0x198] sm:$0xff]
    %v1118 = vld [vmem:[#allocation7 + $0x1a0] sm:$0xff]
    %v1119 = vld [vmem:[#allocation7 + $0x1a8] sm:$0xff]
    %v1120 = vld [vmem:[#allocation7 + $0x1b0] sm:$0xff]
    %v1121 = vld [vmem:[#allocation7 + $0x1b8] sm:$0xff]
    %v1122 = vld [vmem:[#allocation7 + $0x1c0] sm:$0xff]
    %v1123 = vld [vmem:[#allocation7 + $0x1c8] sm:$0xff]
    %v1124 = vld [vmem:[#allocation7 + $0x1d0] sm:$0xff]
    %v1125 = vld [vmem:[#allocation7 + $0x1d8] sm:$0xff]
    %v1126 = vld [vmem:[#allocation7 + $0x1e0] sm:$0xff]
    %v1127 = vld [vmem:[#allocation7 + $0x1e8] sm:$0xff]
    %v1128 = vld [vmem:[#allocation7 + $0x1f0] sm:$0xff]
    %v1129 = vld [vmem:[#allocation7 + $0x1f8] sm:$0xff]
    %v1130 = vld [vmem:[%s8] sm:$0xf]
    %v1132 = vlaneseq
    %v1133 = vshrl.u32 %v1132, 7
    %v1134 = vsub.s32 0, %v1133
    %v1135 = vrot.slane %v1130, %v1134
    %v1136 = vlaneseq
    %v1137 = vshrl.u32 %v1136, 7
    %v1138 = vsub.s32 1, %v1137
    %v1139 = vrot.slane %v1130, %v1138
    %v1140 = vlaneseq
    %v1141 = vshrl.u32 %v1140, 7
    %v1142 = vsub.s32 2, %v1141
    %v1143 = vrot.slane %v1130, %v1142
    %v1144 = vlaneseq
    %v1145 = vshrl.u32 %v1144, 7
    %v1146 = vsub.s32 3, %v1145
    %v1147 = vrot.slane %v1130, %v1146
    %v1216 = vunpack.c.l.b16 %v1066
    %v1217 = vunpack.c.h.b16 %v1066
    %v1218 = vunpack.c.l.b16 %v1067
    %v1219 = vunpack.c.h.b16 %v1067
    %v1220 = vunpack.c.l.b16 %v1068
    %v1221 = vunpack.c.h.b16 %v1068
    %v1222 = vunpack.c.l.b16 %v1069
    %v1223 = vunpack.c.h.b16 %v1069
    %v1224 = vunpack.c.l.b16 %v1070
    %v1225 = vunpack.c.h.b16 %v1070
    %v1226 = vunpack.c.l.b16 %v1071
    %v1227 = vunpack.c.h.b16 %v1071
    %v1228 = vunpack.c.l.b16 %v1072
    %v1229 = vunpack.c.h.b16 %v1072
    %v1230 = vunpack.c.l.b16 %v1073
    %v1231 = vunpack.c.h.b16 %v1073
    %v1232 = vunpack.c.l.b16 %v1074
    %v1233 = vunpack.c.h.b16 %v1074
    %v1234 = vunpack.c.l.b16 %v1075
    %v1235 = vunpack.c.h.b16 %v1075
    %v1236 = vunpack.c.l.b16 %v1076
    %v1237 = vunpack.c.h.b16 %v1076
    %v1238 = vunpack.c.l.b16 %v1077
    %v1239 = vunpack.c.h.b16 %v1077
    %v1240 = vunpack.c.l.b16 %v1078
    %v1241 = vunpack.c.h.b16 %v1078
    %v1242 = vunpack.c.l.b16 %v1079
    %v1243 = vunpack.c.h.b16 %v1079
    %v1244 = vunpack.c.l.b16 %v1080
    %v1245 = vunpack.c.h.b16 %v1080
    %v1246 = vunpack.c.l.b16 %v1081
    %v1247 = vunpack.c.h.b16 %v1081
    %v1248 = vunpack.c.l.b16 %v1082
    %v1249 = vunpack.c.h.b16 %v1082
    %v1250 = vunpack.c.l.b16 %v1083
    %v1251 = vunpack.c.h.b16 %v1083
    %v1252 = vunpack.c.l.b16 %v1084
    %v1253 = vunpack.c.h.b16 %v1084
    %v1254 = vunpack.c.l.b16 %v1085
    %v1255 = vunpack.c.h.b16 %v1085
    %v1256 = vunpack.c.l.b16 %v1086
    %v1257 = vunpack.c.h.b16 %v1086
    %v1258 = vunpack.c.l.b16 %v1087
    %v1259 = vunpack.c.h.b16 %v1087
    %v1260 = vunpack.c.l.b16 %v1088
    %v1261 = vunpack.c.h.b16 %v1088
    %v1262 = vunpack.c.l.b16 %v1089
    %v1263 = vunpack.c.h.b16 %v1089
    %v1264 = vunpack.c.l.b16 %v1090
    %v1265 = vunpack.c.h.b16 %v1090
    %v1266 = vunpack.c.l.b16 %v1091
    %v1267 = vunpack.c.h.b16 %v1091
    %v1268 = vunpack.c.l.b16 %v1092
    %v1269 = vunpack.c.h.b16 %v1092
    %v1270 = vunpack.c.l.b16 %v1093
    %v1271 = vunpack.c.h.b16 %v1093
    %v1272 = vunpack.c.l.b16 %v1094
    %v1273 = vunpack.c.h.b16 %v1094
    %v1274 = vunpack.c.l.b16 %v1095
    %v1275 = vunpack.c.h.b16 %v1095
    %v1276 = vunpack.c.l.b16 %v1096
    %v1277 = vunpack.c.h.b16 %v1096
    %v1278 = vunpack.c.l.b16 %v1097
    %v1279 = vunpack.c.h.b16 %v1097
    %v1280 = vunpack.c.l.b16 %v1098
    %v1281 = vunpack.c.h.b16 %v1098
    %v1282 = vunpack.c.l.b16 %v1099
    %v1283 = vunpack.c.h.b16 %v1099
    %v1284 = vunpack.c.l.b16 %v1100
    %v1285 = vunpack.c.h.b16 %v1100
    %v1286 = vunpack.c.l.b16 %v1101
    %v1287 = vunpack.c.h.b16 %v1101
    %v1288 = vunpack.c.l.b16 %v1102
    %v1289 = vunpack.c.h.b16 %v1102
    %v1290 = vunpack.c.l.b16 %v1103
    %v1291 = vunpack.c.h.b16 %v1103
    %v1292 = vunpack.c.l.b16 %v1104
    %v1293 = vunpack.c.h.b16 %v1104
    %v1294 = vunpack.c.l.b16 %v1105
    %v1295 = vunpack.c.h.b16 %v1105
    %v1296 = vunpack.c.l.b16 %v1106
    %v1297 = vunpack.c.h.b16 %v1106
    %v1298 = vunpack.c.l.b16 %v1107
    %v1299 = vunpack.c.h.b16 %v1107
    %v1300 = vunpack.c.l.b16 %v1108
    %v1301 = vunpack.c.h.b16 %v1108
    %v1302 = vunpack.c.l.b16 %v1109
    %v1303 = vunpack.c.h.b16 %v1109
    %v1304 = vunpack.c.l.b16 %v1110
    %v1305 = vunpack.c.h.b16 %v1110
    %v1306 = vunpack.c.l.b16 %v1111
    %v1307 = vunpack.c.h.b16 %v1111
    %v1308 = vunpack.c.l.b16 %v1112
    %v1309 = vunpack.c.h.b16 %v1112
    %v1310 = vunpack.c.l.b16 %v1113
    %v1311 = vunpack.c.h.b16 %v1113
    %v1312 = vunpack.c.l.b16 %v1114
    %v1313 = vunpack.c.h.b16 %v1114
    %v1314 = vunpack.c.l.b16 %v1115
    %v1315 = vunpack.c.h.b16 %v1115
    %v1316 = vunpack.c.l.b16 %v1116
    %v1317 = vunpack.c.h.b16 %v1116
    %v1318 = vunpack.c.l.b16 %v1117
    %v1319 = vunpack.c.h.b16 %v1117
    %v1320 = vunpack.c.l.b16 %v1118
    %v1321 = vunpack.c.h.b16 %v1118
    %v1322 = vunpack.c.l.b16 %v1119
    %v1323 = vunpack.c.h.b16 %v1119
    %v1324 = vunpack.c.l.b16 %v1120
    %v1325 = vunpack.c.h.b16 %v1120
    %v1326 = vunpack.c.l.b16 %v1121
    %v1327 = vunpack.c.h.b16 %v1121
    %v1328 = vunpack.c.l.b16 %v1122
    %v1329 = vunpack.c.h.b16 %v1122
    %v1330 = vunpack.c.l.b16 %v1123
    %v1331 = vunpack.c.h.b16 %v1123
    %v1332 = vunpack.c.l.b16 %v1124
    %v1333 = vunpack.c.h.b16 %v1124
    %v1334 = vunpack.c.l.b16 %v1125
    %v1335 = vunpack.c.h.b16 %v1125
    %v1336 = vunpack.c.l.b16 %v1126
    %v1337 = vunpack.c.h.b16 %v1126
    %v1338 = vunpack.c.l.b16 %v1127
    %v1339 = vunpack.c.h.b16 %v1127
    %v1340 = vunpack.c.l.b16 %v1128
    %v1341 = vunpack.c.h.b16 %v1128
    %v1342 = vunpack.c.l.b16 %v1129
    %v1343 = vunpack.c.h.b16 %v1129
    %v1344 = vpack.c.b16 %v1220, %v1216
    %v1345 = vpack.c.b16 %v1221, %v1217
    %v1346 = vpack.c.b16 %v1222, %v1218
    %v1347 = vpack.c.b16 %v1223, %v1219
    %v1348 = vpack.c.b16 %v1228, %v1224
    %v1349 = vpack.c.b16 %v1229, %v1225
    %v1350 = vpack.c.b16 %v1230, %v1226
    %v1351 = vpack.c.b16 %v1231, %v1227
    %v1352 = vpack.c.b16 %v1236, %v1232
    %v1353 = vpack.c.b16 %v1237, %v1233
    %v1354 = vpack.c.b16 %v1238, %v1234
    %v1355 = vpack.c.b16 %v1239, %v1235
    %v1356 = vpack.c.b16 %v1244, %v1240
    %v1357 = vpack.c.b16 %v1245, %v1241
    %v1358 = vpack.c.b16 %v1246, %v1242
    %v1359 = vpack.c.b16 %v1247, %v1243
    %v1360 = vpack.c.b16 %v1252, %v1248
    %v1361 = vpack.c.b16 %v1253, %v1249
    %v1362 = vpack.c.b16 %v1254, %v1250
    %v1363 = vpack.c.b16 %v1255, %v1251
    %v1364 = vpack.c.b16 %v1260, %v1256
    %v1365 = vpack.c.b16 %v1261, %v1257
    %v1366 = vpack.c.b16 %v1262, %v1258
    %v1367 = vpack.c.b16 %v1263, %v1259
    %v1368 = vpack.c.b16 %v1268, %v1264
    %v1369 = vpack.c.b16 %v1269, %v1265
    %v1370 = vpack.c.b16 %v1270, %v1266
    %v1371 = vpack.c.b16 %v1271, %v1267
    %v1372 = vpack.c.b16 %v1276, %v1272
    %v1373 = vpack.c.b16 %v1277, %v1273
    %v1374 = vpack.c.b16 %v1278, %v1274
    %v1375 = vpack.c.b16 %v1279, %v1275
    %v1376 = vpack.c.b16 %v1284, %v1280
    %v1377 = vpack.c.b16 %v1285, %v1281
    %v1378 = vpack.c.b16 %v1286, %v1282
    %v1379 = vpack.c.b16 %v1287, %v1283
    %v1380 = vpack.c.b16 %v1292, %v1288
    %v1381 = vpack.c.b16 %v1293, %v1289
    %v1382 = vpack.c.b16 %v1294, %v1290
    %v1383 = vpack.c.b16 %v1295, %v1291
    %v1384 = vpack.c.b16 %v1300, %v1296
    %v1385 = vpack.c.b16 %v1301, %v1297
    %v1386 = vpack.c.b16 %v1302, %v1298
    %v1387 = vpack.c.b16 %v1303, %v1299
    %v1388 = vpack.c.b16 %v1308, %v1304
    %v1389 = vpack.c.b16 %v1309, %v1305
    %v1390 = vpack.c.b16 %v1310, %v1306
    %v1391 = vpack.c.b16 %v1311, %v1307
    %v1392 = vpack.c.b16 %v1316, %v1312
    %v1393 = vpack.c.b16 %v1317, %v1313
    %v1394 = vpack.c.b16 %v1318, %v1314
    %v1395 = vpack.c.b16 %v1319, %v1315
    %v1396 = vpack.c.b16 %v1324, %v1320
    %v1397 = vpack.c.b16 %v1325, %v1321
    %v1398 = vpack.c.b16 %v1326, %v1322
    %v1399 = vpack.c.b16 %v1327, %v1323
    %v1400 = vpack.c.b16 %v1332, %v1328
    %v1401 = vpack.c.b16 %v1333, %v1329
    %v1402 = vpack.c.b16 %v1334, %v1330
    %v1403 = vpack.c.b16 %v1335, %v1331
    %v1404 = vpack.c.b16 %v1340, %v1336
    %v1405 = vpack.c.b16 %v1341, %v1337
    %v1406 = vpack.c.b16 %v1342, %v1338
    %v1407 = vpack.c.b16 %v1343, %v1339
    %1472 = vmatprep.subr.bf16.mxu0 %v1373
    %1473 = vmatpush1.bf16.msra.mxu0 %v1372
    %1474 = vmatprep.subr.bf16.mxu0 %v1369
    %1475 = vmatpush1.bf16.msra.mxu0 %v1368
    %1476 = vmatprep.subr.bf16.mxu0 %v1365
    %1477 = vmatpush1.bf16.msra.mxu0 %v1364
    %1478 = vmatprep.subr.bf16.mxu0 %v1361
    %1479 = vmatpush1.bf16.msra.mxu0 %v1360
    %1480 = vmatprep.subr.bf16.mxu0 %v1357
    %1481 = vmatpush1.bf16.msra.mxu0 %v1356
    %1482 = vmatprep.subr.bf16.mxu0 %v1353
    %1483 = vmatpush1.bf16.msra.mxu0 %v1352
    %1484 = vmatprep.subr.bf16.mxu0 %v1349
    %1485 = vmatpush1.bf16.msra.mxu0 %v1348
    %1486 = vmatprep.subr.bf16.mxu0 %v1345
    %1487 = vmatpush1.bf16.msra.mxu0 %v1344
    %1488 = vmatprep.subr.bf16.mxu0 %v1405
    %1489 = vmatpush2.bf16.msra.mxu0 %v1404
    %1490 = vmatprep.subr.bf16.mxu0 %v1401
    %1491 = vmatpush2.bf16.msra.mxu0 %v1400
    %1492 = vmatprep.subr.bf16.mxu0 %v1397
    %1493 = vmatpush2.bf16.msra.mxu0 %v1396
    %1494 = vmatprep.subr.bf16.mxu0 %v1393
    %1495 = vmatpush2.bf16.msra.mxu0 %v1392
    %1496 = vmatprep.subr.bf16.mxu0 %v1389
    %1497 = vmatpush2.bf16.msra.mxu0 %v1388
    %1498 = vmatprep.subr.bf16.mxu0 %v1385
    %1499 = vmatpush2.bf16.msra.mxu0 %v1384
    %1500 = vmatprep.subr.bf16.mxu0 %v1381
    %1501 = vmatpush2.bf16.msra.mxu0 %v1380
    %1502 = vmatprep.subr.bf16.mxu0 %v1377
    %1503 = vmatpush2.bf16.msra.mxu0 %v1376
    %1504 = vmatprep.mubr.bf16.mxu0 %v1065
    %1505 = vmatmul.mubr.bf16.gmra.mxu0 %v1064
    %v1506 = vpop.f32.mrf.mxu0
    %v1507 = vadd.f32 %v1135, %v1506
    %v1508 = vpop.f32.mrf.mxu0
    %v1509 = vadd.f32 %v1139, %v1508
    %v1510 = vpop.f32.mrf.mxu0
    %v1511 = vpop.f32.mrf.mxu0
    %1512 = vdwg.mxu0
    %1513 = vmatprep.subr.bf16.mxu0 %v1375
    %1514 = vmatpush1.bf16.msra.mxu0 %v1374
    %1515 = vmatprep.subr.bf16.mxu0 %v1371
    %1516 = vmatpush1.bf16.msra.mxu0 %v1370
    %1517 = vmatprep.subr.bf16.mxu0 %v1367
    %1518 = vmatpush1.bf16.msra.mxu0 %v1366
    %1519 = vmatprep.subr.bf16.mxu0 %v1363
    %1520 = vmatpush1.bf16.msra.mxu0 %v1362
    %1521 = vmatprep.subr.bf16.mxu0 %v1359
    %1522 = vmatpush1.bf16.msra.mxu0 %v1358
    %1523 = vmatprep.subr.bf16.mxu0 %v1355
    %1524 = vmatpush1.bf16.msra.mxu0 %v1354
    %1525 = vmatprep.subr.bf16.mxu0 %v1351
    %1526 = vmatpush1.bf16.msra.mxu0 %v1350
    %1527 = vmatprep.subr.bf16.mxu0 %v1347
    %1528 = vmatpush1.bf16.msra.mxu0 %v1346
    %1529 = vmatprep.subr.bf16.mxu0 %v1407
    %1530 = vmatpush2.bf16.msra.mxu0 %v1406
    %1531 = vmatprep.subr.bf16.mxu0 %v1403
    %1532 = vmatpush2.bf16.msra.mxu0 %v1402
    %1533 = vmatprep.subr.bf16.mxu0 %v1399
    %1534 = vmatpush2.bf16.msra.mxu0 %v1398
    %1535 = vmatprep.subr.bf16.mxu0 %v1395
    %1536 = vmatpush2.bf16.msra.mxu0 %v1394
    %1537 = vmatprep.subr.bf16.mxu0 %v1391
    %1538 = vmatpush2.bf16.msra.mxu0 %v1390
    %1539 = vmatprep.subr.bf16.mxu0 %v1387
    %1540 = vmatpush2.bf16.msra.mxu0 %v1386
    %1541 = vmatprep.subr.bf16.mxu0 %v1383
    %1542 = vmatpush2.bf16.msra.mxu0 %v1382
    %1543 = vmatprep.subr.bf16.mxu0 %v1379
    %1544 = vmatpush2.bf16.msra.mxu0 %v1378
    %1545 = vmatprep.mubr.bf16.mxu0 %v1065
    %1546 = vmatmul.mubr.bf16.gmra.mxu0 %v1064
    %v1547 = vpop.f32.mrf.mxu0
    %v1548 = vadd.f32 %v1143, %v1547
    %v1549 = vpop.f32.mrf.mxu0
    %v1550 = vadd.f32 %v1147, %v1549
    %v1551 = vpop.f32.mrf.mxu0
    %v1552 = vpop.f32.mrf.mxu0
    %1553 = vdwg.mxu0
    %1554 = vst [vmem:[#allocation8] sm:$0xff] %v1507
    %1555 = vst [vmem:[#allocation8 + $0x8] sm:$0xff] %v1509
    %1556 = vst [vmem:[#allocation8 + $0x10] sm:$0xff] %v1548
    %1557 = vst [vmem:[#allocation8 + $0x18] sm:$0xff] %v1550
    // Predicated region
    $region50: #{vphi_forward.1} parent=1 // pred_check
      _
    $region51: #{vphi_forward.1} parent=1 // pred_check_branch
      %1559 = sbr.rel (0) target = $region53
    $region52: #{vphi_forward.1} parent=1 // pred_region
      %s1561 = ssub.s32 512, 512
      %1562 = vsyncadd [#allocation4], %s1561
      %s1564 = sshll.u32 [#allocation8], 4
      %s1565 = int_to_ptr.vmem [resolvable:$true] %s1564
      %1567 = dma.vmem_to_hbm [thread:$0]  %s1565, 512, %s9, [#allocation4]
    $region53: #{vphi_forward.1} parent=1 // pred_fallthru
      _
    // Predicated region
    $region54: #{vphi_forward.1} parent=1 // pred_check
      _
    $region55: #{vphi_forward.1} parent=1 // pred_check_branch
      %1569 = sbr.rel (0) target = $region57
    $region56: #{vphi_forward.1} parent=1 // pred_region
      %1570 = dma.done [#allocation4], 512
    $region57: #{vphi_forward.1} parent=1 // pred_fallthru
      _
    %1571 = vsyncpa [#allocation3], 1
    %1572 = vsyncpa [#allocation6], 1
    %1573 = vsyncpa [#allocation4], 1

</llo_original>
